<compile_context>
chip_gen: v6e
topology: v6e:2x2x1
jax: 0.10.0
libtpu: 0.0.40
codegen_flags: <defaults>
</compile_context>

<pallas_src>
import math

import jax
import jax.numpy as jnp
from jax.experimental import pallas as pl
from jax.experimental.pallas import tpu as pltpu


def _gelu_exact(y):
    # PyTorch nn.GELU() default (exact, erf-based).  If tolerance permits,
    # jnp.tanh-form GELU moves this work from the VALU to the (free) EUP slot.
    return 0.5 * y * (1.0 + jax.lax.erf(y * (1.0 / math.sqrt(2.0))))


def _ffn_kernel(x_ref, w1_ref, b1_ref, w2_ref, b2_ref, o_ref):
    x = x_ref[...]                                                   # (bm, Dp)
    # Linear(D, d_ff) + GELU -- hidden is lane-dense (Fp multiple of 128).
    h = jnp.dot(x, w1_ref[...], preferred_element_type=jnp.float32) + b1_ref[...]
    h = _gelu_exact(h)
    # Dropout: identity at inference.
    # TODO(synk): train-mode dropout would need pltpu.prng_seed/prng_random_bits
    # plus a 1/(1-p) rescale.
    y = jnp.dot(h, w2_ref[...], preferred_element_type=jnp.float32) + b2_ref[...]
    o_ref[...] = y.astype(o_ref.dtype)


def _round_up(a, m):
    return ((a + m - 1) // m) * m


def feed_forward(x, w1, b1, w2, b2, *, block_rows=None):
    """x: (..., D). w1: (D, d_ff), b1: (1, d_ff), w2: (d_ff, D), b2: (1, D)."""
    orig_shape = x.shape
    D = orig_shape[-1]
    d_ff = w1.shape[1]
    M = 1
    for s in orig_shape[:-1]:
        M *= s

    # ---- lane-dense packing for narrow models (D < 128) --------------------
    # Reinterpret activations (M, D) as (M/pack, pack*D) so the HBM-facing last
    # dim is a full 128 lanes.  The weights become block-diagonal so the kernel
    # needs no in-kernel reshape; the result is bit-for-bit the same FFN.
    pack = 1
    if D < 128 and 128 % D == 0:
        p = 128 // D                    # power of two for D in {1,2,...,64}
        while p > 1 and M % p != 0:
            p //= 2
        pack = max(p, 1)

    Mp, Dp, Fp = M // pack, D * pack, d_ff * pack
    x2 = x.reshape(Mp, Dp)

    if pack > 1:
        w1p = jax.scipy.linalg.block_diag(*([w1] * pack))   # (Dp, Fp)
        w2p = jax.scipy.linalg.block_diag(*([w2] * pack))   # (Fp, Dp)
        b1p = jnp.tile(b1, (1, pack))                        # (1, Fp)
        b2p = jnp.tile(b2, (1, pack))                        # (1, Dp)
    else:
        w1p, w2p, b1p, b2p = w1, w2, b1, b2

    # ---- row tiling (no wrapper padding; Pallas clips any ragged last block)
    if block_rows is None:
        if Mp <= 16:
            block_rows = Mp                              # tiny: one grid step
        else:
            # >= 2 row blocks so v7x's second TensorCore has work; ~512
            # original rows per tile for the v5e/v6e HBM roofline.
            target = max(8, 512 // pack)
            block_rows = min(target, _round_up(pl.cdiv(Mp, 2), 8))
    block_rows = max(1, min(block_rows, Mp))

    n_blocks = pl.cdiv(Mp, block_rows)

    const2 = lambda i: (0, 0)   # weights/biases: resident, constant block index

    # Rough VMEM working set: double-buffered in/out activation tiles,
    # double-buffered resident weights, hidden intermediate (+ slack).
    itemsize = 4
    vmem_est = (
        2 * 2 * block_rows * Dp * itemsize
        + 2 * (Dp * Fp + Fp + Fp * Dp + Dp) * itemsize
        + 2 * block_rows * Fp * itemsize
    )
    compiler_kwargs = dict(dimension_semantics=("parallel",))
    if vmem_est > (12 << 20):   # only raise above the v5e 16 MiB scoped default
        compiler_kwargs["vmem_limit_bytes"] = int(min(2 * vmem_est, 64 << 20))

    cost = pl.CostEstimate(
        flops=4 * M * D * d_ff,                 # two matmuls, 2*M*D*d_ff each
        transcendentals=M * d_ff,               # one erf per hidden element
        bytes_accessed=(2 * M * D + 2 * D * d_ff + d_ff + D) * itemsize,
    )

    out = pl.pallas_call(
        _ffn_kernel,
        out_shape=jax.ShapeDtypeStruct((Mp, Dp), x.dtype),
        grid_spec=pltpu.PrefetchScalarGridSpec(
            num_scalar_prefetch=0,
            grid=(n_blocks,),
            in_specs=[
                pl.BlockSpec((block_rows, Dp), lambda i: (i, 0)),   # activations
                pl.BlockSpec((Dp, Fp), const2),                     # w1 (resident)
                pl.BlockSpec((1, Fp), const2),                      # b1
                pl.BlockSpec((Fp, Dp), const2),                     # w2
                pl.BlockSpec((1, Dp), const2),                      # b2
            ],
            out_specs=pl.BlockSpec((block_rows, Dp), lambda i: (i, 0)),
        ),
        compiler_params=pltpu.CompilerParams(**compiler_kwargs),
        cost_estimate=cost,
    )(x2, w1p, b1p, w2p, b2p)

    return out.reshape(orig_shape)


def feed_forward_ref(x, w1, b1, w2, b2):
    h = _gelu_exact(x @ w1 + b1[0])
    return h @ w2 + b2[0]


if __name__ == "__main__":
    B, L, D = 2, 8, 32        # d_input = 32
    d_ff = 256                # nn.Linear(d_input, 256)

    key = jax.random.PRNGKey(0)
    k0, k1, k2, k3, k4 = jax.random.split(key, 5)

    def w(k, shape, scale=0.05):
        return (scale * jax.random.normal(k, shape)).astype(jnp.float32)

    w1 = w(k0, (D, d_ff))
    b1 = w(k1, (1, d_ff))
    w2 = w(k2, (d_ff, D))
    b2 = w(k3, (1, D))
    x = jax.random.normal(k4, (B, L, D)).astype(jnp.float32)

    out = jax.block_until_ready(feed_forward(x, w1, b1, w2, b2))

    ref = feed_forward_ref(x, w1, b1, w2, b2)
    assert out.shape == ref.shape, "shape mismatch vs JAX reference"
    assert jnp.allclose(out, ref, atol=1e-4, rtol=1e-4), "mismatch vs JAX reference"

    print("KERNEL_OK")
</pallas_src>

<mosaic_0001>
module attributes {stable_mosaic.version = 11 : i64} {
  func.func @_ffn_kernel(%arg0: i32, %arg1: memref<4x128xf32, #tpu.memory_space<vmem>>, %arg2: memref<128x1024xf32, #tpu.memory_space<vmem>>, %arg3: memref<1x1024xf32, #tpu.memory_space<vmem>>, %arg4: memref<1024x128xf32, #tpu.memory_space<vmem>>, %arg5: memref<1x128xf32, #tpu.memory_space<vmem>>, %arg6: memref<4x128xf32, #tpu.memory_space<vmem>>) attributes {dimension_semantics = [#tpu.dimension_semantics<parallel>], iteration_bounds = array<i64: 1>, scalar_prefetch = 0 : i64, scratch_operands = 0 : i64, tpu.core_type = #tpu.core_type<tc>, window_params = [{transform_indices = @transform_0, window_bounds = array<i64: 4, 128>}, {pipeline_mode = #tpu.pipeline_mode<synchronous>, transform_indices = @transform_1, window_bounds = array<i64: 128, 1024>}, {pipeline_mode = #tpu.pipeline_mode<synchronous>, transform_indices = @transform_2, window_bounds = array<i64: 1, 1024>}, {pipeline_mode = #tpu.pipeline_mode<synchronous>, transform_indices = @transform_3, window_bounds = array<i64: 1024, 128>}, {pipeline_mode = #tpu.pipeline_mode<synchronous>, transform_indices = @transform_4, window_bounds = array<i64: 1, 128>}, {transform_indices = @transform_5, window_bounds = array<i64: 4, 128>}]} {
    %c0 = arith.constant 0 : index
    %c0_0 = arith.constant 0 : index
    %0 = vector.load %arg1[%c0, %c0_0] : memref<4x128xf32, #tpu.memory_space<vmem>>, vector<4x128xf32>
    %c0_1 = arith.constant 0 : index
    %c0_2 = arith.constant 0 : index
    %1 = vector.load %arg2[%c0_1, %c0_2] : memref<128x1024xf32, #tpu.memory_space<vmem>>, vector<128x1024xf32>
    %cst = arith.constant dense<0.000000e+00> : vector<4x1024xf32>
    %2 = tpu.matmul %0, %1, %cst {dimension_numbers = #tpu.dot_dimension_numbers<[1], [0], [0], [1], [0, 0, 1, 1], [], []>} : vector<4x128xf32>, vector<128x1024xf32>, vector<4x1024xf32> -> vector<4x1024xf32>
    %c0_3 = arith.constant 0 : index
    %c0_4 = arith.constant 0 : index
    %3 = vector.load %arg3[%c0_3, %c0_4] : memref<1x1024xf32, #tpu.memory_space<vmem>>, vector<1x1024xf32>
    %4 = vector.broadcast %3 : vector<1x1024xf32> to vector<4x1024xf32>
    %5 = arith.addf %2, %4 : vector<4x1024xf32>
    %cst_5 = arith.constant 5.000000e-01 : f32
    %6 = vector.broadcast %cst_5 : f32 to vector<4x1024xf32>
    %7 = arith.mulf %6, %5 : vector<4x1024xf32>
    %cst_6 = arith.constant 0.707106769 : f32
    %8 = vector.broadcast %cst_6 : f32 to vector<4x1024xf32>
    %9 = arith.mulf %5, %8 : vector<4x1024xf32>
    %10 = math.erf %9 : vector<4x1024xf32>
    %cst_7 = arith.constant 1.000000e+00 : f32
    %11 = vector.broadcast %cst_7 : f32 to vector<4x1024xf32>
    %12 = arith.addf %11, %10 : vector<4x1024xf32>
    %13 = arith.mulf %7, %12 : vector<4x1024xf32>
    %c0_8 = arith.constant 0 : index
    %c0_9 = arith.constant 0 : index
    %14 = vector.load %arg4[%c0_8, %c0_9] : memref<1024x128xf32, #tpu.memory_space<vmem>>, vector<1024x128xf32>
    %cst_10 = arith.constant dense<0.000000e+00> : vector<4x128xf32>
    %15 = tpu.matmul %13, %14, %cst_10 {dimension_numbers = #tpu.dot_dimension_numbers<[1], [0], [0], [1], [0, 0, 1, 1], [], []>} : vector<4x1024xf32>, vector<1024x128xf32>, vector<4x128xf32> -> vector<4x128xf32>
    %c0_11 = arith.constant 0 : index
    %c0_12 = arith.constant 0 : index
    %16 = vector.load %arg5[%c0_11, %c0_12] : memref<1x128xf32, #tpu.memory_space<vmem>>, vector<1x128xf32>
    %17 = vector.broadcast %16 : vector<1x128xf32> to vector<4x128xf32>
    %18 = arith.addf %15, %17 : vector<4x128xf32>
    %c0_13 = arith.constant 0 : index
    %c0_14 = arith.constant 0 : index
    %19 = vector.load %arg6[%c0_13, %c0_14] : memref<4x128xf32, #tpu.memory_space<vmem>>, vector<4x128xf32>
    tpu.vector_store %arg6[%c0_13, %c0_14], %18 {strides = array<i32>} : memref<4x128xf32, #tpu.memory_space<vmem>>, vector<4x128xf32>,
    return
  }
  func.func @transform_0(%arg0: i32) -> (i32, i32) {
    %c0_i32 = arith.constant 0 : i32
    %c0_i32_0 = arith.constant 0 : i32
    return %arg0, %c0_i32 : i32, i32
  }
  func.func @transform_1(%arg0: i32) -> (i32, i32) {
    %c0_i32 = arith.constant 0 : i32
    %c0_i32_0 = arith.constant 0 : i32
    %c0_i32_1 = arith.constant 0 : i32
    return %c0_i32, %c0_i32_0 : i32, i32
  }
  func.func @transform_2(%arg0: i32) -> (i32, i32) {
    %c0_i32 = arith.constant 0 : i32
    %c0_i32_0 = arith.constant 0 : i32
    %c0_i32_1 = arith.constant 0 : i32
    return %c0_i32, %c0_i32_0 : i32, i32
  }
  func.func @transform_3(%arg0: i32) -> (i32, i32) {
    %c0_i32 = arith.constant 0 : i32
    %c0_i32_0 = arith.constant 0 : i32
    %c0_i32_1 = arith.constant 0 : i32
    return %c0_i32, %c0_i32_0 : i32, i32
  }
  func.func @transform_4(%arg0: i32) -> (i32, i32) {
    %c0_i32 = arith.constant 0 : i32
    %c0_i32_0 = arith.constant 0 : i32
    %c0_i32_1 = arith.constant 0 : i32
    return %c0_i32, %c0_i32_0 : i32, i32
  }
  func.func @transform_5(%arg0: i32) -> (i32, i32) {
    %c0_i32 = arith.constant 0 : i32
    %c0_i32_0 = arith.constant 0 : i32
    return %arg0, %c0_i32 : i32, i32
  }
}

</mosaic_0001>

<llo_original>
// kernel: tpu_custom_call.1
$region0: #{tpu_custom_call.1}
  #allocation0 [shape = 'u32[]', space=smem, size = 0x4, offset = 0x4, fixed_abs, tag = 'smem constant byte address 0x4 - core index']
  #allocation1 [shape = 'u32[144,128]{1,0:T(1,128)}', space=vmem, size = 0x12000, scoped, tag = 'internal scratch']
  %s0 = inlined_call_operand.hbm [shape: f32[4,128], index: 0, kind: input, shape index: {}]
  %s1 = inlined_call_operand.hbm [shape: f32[128,1024], index: 1, kind: input, shape index: {}]
  %s2 = inlined_call_operand.hbm [shape: f32[1,1024], index: 2, kind: input, shape index: {}]
  %s3 = inlined_call_operand.hbm [shape: f32[1024,128], index: 3, kind: input, shape index: {}]
  %s4 = inlined_call_operand.vmem [shape: f32[1,128], index: 4, kind: input, shape index: {}]
  %s5 = inlined_call_operand.hbm [shape: f32[4,128], index: 5, kind: output, shape index: {}]
  %s6 = sld [smem:[#allocation0]]
  $region46: #{tpu_custom_call.1} parent=0
    _
  %s8 = ssub.s32 1, %s6
  %s9 = scalar_select 0, %s8, %s6
  $region1: #{tpu_custom_call.1} parent=0
    #allocation2 [shape = 'u8[2048]{0}', space=vmem, size = 0x800, scoped, tag = 'input window, operand 0, single buffered']
    #allocation3 [shape = 's32[1]{0}', space=sflag, size = 0x4, scoped, tag = 'scoped memory for tpu_custom_call.1']
    #allocation4 [shape = 's32[1]{0}', space=sflag, size = 0x4, scoped, tag = 'scoped memory for tpu_custom_call.1']
    #allocation5 [shape = 'u8[524288]{0}', space=vmem, size = 0x80000, scoped, tag = 'input window, operand 1, single buffered']
    #allocation6 [shape = 's32[1]{0}', space=sflag, size = 0x4, scoped, tag = 'scoped memory for tpu_custom_call.1']
    #allocation7 [shape = 'u8[4096]{0}', space=vmem, size = 0x1000, scoped, tag = 'input window, operand 2, single buffered']
    #allocation8 [shape = 'u8[524288]{0}', space=vmem, size = 0x80000, scoped, tag = 'input window, operand 3, single buffered']
    #allocation9 [shape = 's32[1]{0}', space=sflag, size = 0x4, scoped, tag = 'scoped memory for tpu_custom_call.1']
    #allocation10 [shape = 'u8[2048]{0}', space=vmem, size = 0x800, scoped, tag = 'output window, operand 0, single buffered']
    %10 = vsyncpa [#allocation3], 0
    %11 = vsyncpa [#allocation6], 0
    %12 = vsyncpa [#allocation9], 0
    %13 = vsyncpa [#allocation4], 0
    // Predicated region
    $region2: #{tpu_custom_call.1} parent=1 // pred_check
      _
    $region3: #{tpu_custom_call.1} parent=1 // pred_check_branch
      %15 = sbr.rel (0) target = $region5
    $region4: #{tpu_custom_call.1} parent=1 // pred_region
      %s17 = ssub.s32 64, 64
      %18 = vsyncadd [#allocation3], %s17
      %s20 = sshll.u32 [#allocation2], 4
      %s21 = int_to_ptr.vmem [resolvable:$true] %s20
      %23 = dma.hbm_to_vmem [thread:$0]  %s0, 64, %s21, [#allocation3]
    $region5: #{tpu_custom_call.1} parent=1 // pred_fallthru
      _
    // Predicated region
    $region6: #{tpu_custom_call.1} parent=1 // pred_check
      _
    $region7: #{tpu_custom_call.1} parent=1 // pred_check_branch
      %25 = sbr.rel (0) target = $region9
    $region8: #{tpu_custom_call.1} parent=1 // pred_region
      %s27 = ssub.s32 16384, 16384
      %28 = vsyncadd [#allocation6], %s27
      %s29 = sshll.u32 [#allocation5], 4
      %s30 = int_to_ptr.vmem [resolvable:$true] %s29
      %35 = dma.hbm_to_vmem [thread:$0]  %s1, 16384, %s30, [#allocation6], 1024, 1024, 64
    $region9: #{tpu_custom_call.1} parent=1 // pred_fallthru
      _
    // Predicated region
    $region10: #{tpu_custom_call.1} parent=1 // pred_check
      _
    $region11: #{tpu_custom_call.1} parent=1 // pred_check_branch
      %37 = sbr.rel (0) target = $region13
    $region12: #{tpu_custom_call.1} parent=1 // pred_region
      %s39 = ssub.s32 128, 128
      %40 = vsyncadd [#allocation6], %s39
      %s42 = sshll.u32 [#allocation7], 4
      %s43 = int_to_ptr.vmem [resolvable:$true] %s42
      %45 = dma.hbm_to_vmem [thread:$0]  %s2, 128, %s43, [#allocation6]
    $region13: #{tpu_custom_call.1} parent=1 // pred_fallthru
      _
    // Predicated region
    $region14: #{tpu_custom_call.1} parent=1 // pred_check
      _
    $region15: #{tpu_custom_call.1} parent=1 // pred_check_branch
      %47 = sbr.rel (0) target = $region17
    $region16: #{tpu_custom_call.1} parent=1 // pred_region
      %s49 = ssub.s32 16384, 16384
      %50 = vsyncadd [#allocation9], %s49
      %s51 = sshll.u32 [#allocation8], 4
      %s52 = int_to_ptr.vmem [resolvable:$true] %s51
      %57 = dma.hbm_to_vmem [thread:$0]  %s3, 16384, %s52, [#allocation9], 128, 128, 8
    $region17: #{tpu_custom_call.1} parent=1 // pred_fallthru
      _
    // Predicated region
    $region18: #{tpu_custom_call.1} parent=1 // pred_check
      _
    $region19: #{tpu_custom_call.1} parent=1 // pred_check_branch
      %59 = sbr.rel (0) target = $region21
    $region20: #{tpu_custom_call.1} parent=1 // pred_region
      _
    $region21: #{tpu_custom_call.1} parent=1 // pred_fallthru
      _
    // Predicated region
    $region22: #{tpu_custom_call.1} parent=1 // pred_check
      _
    $region23: #{tpu_custom_call.1} parent=1 // pred_check_branch
      %61 = sbr.rel (0) target = $region25
    $region24: #{tpu_custom_call.1} parent=1 // pred_region
      %62 = dma.done [#allocation3], 64
    $region25: #{tpu_custom_call.1} parent=1 // pred_fallthru
      _
    // Predicated region
    $region26: #{tpu_custom_call.1} parent=1 // pred_check
      _
    $region27: #{tpu_custom_call.1} parent=1 // pred_check_branch
      %64 = sbr.rel (0) target = $region29
    $region28: #{tpu_custom_call.1} parent=1 // pred_region
      %65 = dma.done [#allocation6], 16384
    $region29: #{tpu_custom_call.1} parent=1 // pred_fallthru
      _
    // Predicated region
    $region30: #{tpu_custom_call.1} parent=1 // pred_check
      _
    $region31: #{tpu_custom_call.1} parent=1 // pred_check_branch
      %67 = sbr.rel (0) target = $region33
    $region32: #{tpu_custom_call.1} parent=1 // pred_region
      %68 = dma.done [#allocation6], 128
    $region33: #{tpu_custom_call.1} parent=1 // pred_fallthru
      _
    // Predicated region
    $region34: #{tpu_custom_call.1} parent=1 // pred_check
      _
    $region35: #{tpu_custom_call.1} parent=1 // pred_check_branch
      %70 = sbr.rel (0) target = $region37
    $region36: #{tpu_custom_call.1} parent=1 // pred_region
      %71 = dma.done [#allocation9], 16384
    $region37: #{tpu_custom_call.1} parent=1 // pred_fallthru
      _
    %v72 = vld [vmem:[#allocation2] sm:$0xf]
    %v73 = vld [vmem:[#allocation5] sm:$0xff]
    %v74 = vld [vmem:[#allocation5 + $0x8] sm:$0xff]
    %v75 = vld [vmem:[#allocation5 + $0x10] sm:$0xff]
    %v76 = vld [vmem:[#allocation5 + $0x18] sm:$0xff]
    %v77 = vld [vmem:[#allocation5 + $0x20] sm:$0xff]
    %v78 = vld [vmem:[#allocation5 + $0x28] sm:$0xff]
    %v79 = vld [vmem:[#allocation5 + $0x30] sm:$0xff]
    %v80 = vld [vmem:[#allocation5 + $0x38] sm:$0xff]
    %v81 = vld [vmem:[#allocation5 + $0x40] sm:$0xff]
    %v82 = vld [vmem:[#allocation5 + $0x48] sm:$0xff]
    %v83 = vld [vmem:[#allocation5 + $0x50] sm:$0xff]
    %v84 = vld [vmem:[#allocation5 + $0x58] sm:$0xff]
    %v85 = vld [vmem:[#allocation5 + $0x60] sm:$0xff]
    %v86 = vld [vmem:[#allocation5 + $0x68] sm:$0xff]
    %v87 = vld [vmem:[#allocation5 + $0x70] sm:$0xff]
    %v88 = vld [vmem:[#allocation5 + $0x78] sm:$0xff]
    %v89 = vld [vmem:[#allocation5 + $0x80] sm:$0xff]
    %v90 = vld [vmem:[#allocation5 + $0x88] sm:$0xff]
    %v91 = vld [vmem:[#allocation5 + $0x90] sm:$0xff]
    %v92 = vld [vmem:[#allocation5 + $0x98] sm:$0xff]
    %v93 = vld [vmem:[#allocation5 + $0xa0] sm:$0xff]
    %v94 = vld [vmem:[#allocation5 + $0xa8] sm:$0xff]
    %v95 = vld [vmem:[#allocation5 + $0xb0] sm:$0xff]
    %v96 = vld [vmem:[#allocation5 + $0xb8] sm:$0xff]
    %v97 = vld [vmem:[#allocation5 + $0xc0] sm:$0xff]
    %v98 = vld [vmem:[#allocation5 + $0xc8] sm:$0xff]
    %v99 = vld [vmem:[#allocation5 + $0xd0] sm:$0xff]
    %v100 = vld [vmem:[#allocation5 + $0xd8] sm:$0xff]
    %v101 = vld [vmem:[#allocation5 + $0xe0] sm:$0xff]
    %v102 = vld [vmem:[#allocation5 + $0xe8] sm:$0xff]
    %v103 = vld [vmem:[#allocation5 + $0xf0] sm:$0xff]
    %v104 = vld [vmem:[#allocation5 + $0xf8] sm:$0xff]
    %v105 = vld [vmem:[#allocation5 + $0x100] sm:$0xff]
    %v106 = vld [vmem:[#allocation5 + $0x108] sm:$0xff]
    %v107 = vld [vmem:[#allocation5 + $0x110] sm:$0xff]
    %v108 = vld [vmem:[#allocation5 + $0x118] sm:$0xff]
    %v109 = vld [vmem:[#allocation5 + $0x120] sm:$0xff]
    %v110 = vld [vmem:[#allocation5 + $0x128] sm:$0xff]
    %v111 = vld [vmem:[#allocation5 + $0x130] sm:$0xff]
    %v112 = vld [vmem:[#allocation5 + $0x138] sm:$0xff]
    %v113 = vld [vmem:[#allocation5 + $0x140] sm:$0xff]
    %v114 = vld [vmem:[#allocation5 + $0x148] sm:$0xff]
    %v115 = vld [vmem:[#allocation5 + $0x150] sm:$0xff]
    %v116 = vld [vmem:[#allocation5 + $0x158] sm:$0xff]
    %v117 = vld [vmem:[#allocation5 + $0x160] sm:$0xff]
    %v118 = vld [vmem:[#allocation5 + $0x168] sm:$0xff]
    %v119 = vld [vmem:[#allocation5 + $0x170] sm:$0xff]
    %v120 = vld [vmem:[#allocation5 + $0x178] sm:$0xff]
    %v121 = vld [vmem:[#allocation5 + $0x180] sm:$0xff]
    %v122 = vld [vmem:[#allocation5 + $0x188] sm:$0xff]
    %v123 = vld [vmem:[#allocation5 + $0x190] sm:$0xff]
    %v124 = vld [vmem:[#allocation5 + $0x198] sm:$0xff]
    %v125 = vld [vmem:[#allocation5 + $0x1a0] sm:$0xff]
    %v126 = vld [vmem:[#allocation5 + $0x1a8] sm:$0xff]
    %v127 = vld [vmem:[#allocation5 + $0x1b0] sm:$0xff]
    %v128 = vld [vmem:[#allocation5 + $0x1b8] sm:$0xff]
    %v129 = vld [vmem:[#allocation5 + $0x1c0] sm:$0xff]
    %v130 = vld [vmem:[#allocation5 + $0x1c8] sm:$0xff]
    %v131 = vld [vmem:[#allocation5 + $0x1d0] sm:$0xff]
    %v132 = vld [vmem:[#allocation5 + $0x1d8] sm:$0xff]
    %v133 = vld [vmem:[#allocation5 + $0x1e0] sm:$0xff]
    %v134 = vld [vmem:[#allocation5 + $0x1e8] sm:$0xff]
    %v135 = vld [vmem:[#allocation5 + $0x1f0] sm:$0xff]
    %v136 = vld [vmem:[#allocation5 + $0x1f8] sm:$0xff]
    %v137 = vld [vmem:[#allocation5 + $0x200] sm:$0xff]
    %v138 = vld [vmem:[#allocation5 + $0x208] sm:$0xff]
    %v139 = vld [vmem:[#allocation5 + $0x210] sm:$0xff]
    %v140 = vld [vmem:[#allocation5 + $0x218] sm:$0xff]
    %v141 = vld [vmem:[#allocation5 + $0x220] sm:$0xff]
    %v142 = vld [vmem:[#allocation5 + $0x228] sm:$0xff]
    %v143 = vld [vmem:[#allocation5 + $0x230] sm:$0xff]
    %v144 = vld [vmem:[#allocation5 + $0x238] sm:$0xff]
    %v145 = vld [vmem:[#allocation5 + $0x240] sm:$0xff]
    %v146 = vld [vmem:[#allocation5 + $0x248] sm:$0xff]
    %v147 = vld [vmem:[#allocation5 + $0x250] sm:$0xff]
    %v148 = vld [vmem:[#allocation5 + $0x258] sm:$0xff]
    %v149 = vld [vmem:[#allocation5 + $0x260] sm:$0xff]
    %v150 = vld [vmem:[#allocation5 + $0x268] sm:$0xff]
    %v151 = vld [vmem:[#allocation5 + $0x270] sm:$0xff]
    %v152 = vld [vmem:[#allocation5 + $0x278] sm:$0xff]
    %v153 = vld [vmem:[#allocation5 + $0x280] sm:$0xff]
    %v154 = vld [vmem:[#allocation5 + $0x288] sm:$0xff]
    %v155 = vld [vmem:[#allocation5 + $0x290] sm:$0xff]
    %v156 = vld [vmem:[#allocation5 + $0x298] sm:$0xff]
    %v157 = vld [vmem:[#allocation5 + $0x2a0] sm:$0xff]
    %v158 = vld [vmem:[#allocation5 + $0x2a8] sm:$0xff]
    %v159 = vld [vmem:[#allocation5 + $0x2b0] sm:$0xff]
    %v160 = vld [vmem:[#allocation5 + $0x2b8] sm:$0xff]
    %v161 = vld [vmem:[#allocation5 + $0x2c0] sm:$0xff]
    %v162 = vld [vmem:[#allocation5 + $0x2c8] sm:$0xff]
    %v163 = vld [vmem:[#allocation5 + $0x2d0] sm:$0xff]
    %v164 = vld [vmem:[#allocation5 + $0x2d8] sm:$0xff]
    %v165 = vld [vmem:[#allocation5 + $0x2e0] sm:$0xff]
    %v166 = vld [vmem:[#allocation5 + $0x2e8] sm:$0xff]
    %v167 = vld [vmem:[#allocation5 + $0x2f0] sm:$0xff]
    %v168 = vld [vmem:[#allocation5 + $0x2f8] sm:$0xff]
    %v169 = vld [vmem:[#allocation5 + $0x300] sm:$0xff]
    %v170 = vld [vmem:[#allocation5 + $0x308] sm:$0xff]
    %v171 = vld [vmem:[#allocation5 + $0x310] sm:$0xff]
    %v172 = vld [vmem:[#allocation5 + $0x318] sm:$0xff]
    %v173 = vld [vmem:[#allocation5 + $0x320] sm:$0xff]
    %v174 = vld [vmem:[#allocation5 + $0x328] sm:$0xff]
    %v175 = vld [vmem:[#allocation5 + $0x330] sm:$0xff]
    %v176 = vld [vmem:[#allocation5 + $0x338] sm:$0xff]
    %v177 = vld [vmem:[#allocation5 + $0x340] sm:$0xff]
    %v178 = vld [vmem:[#allocation5 + $0x348] sm:$0xff]
    %v179 = vld [vmem:[#allocation5 + $0x350] sm:$0xff]
    %v180 = vld [vmem:[#allocation5 + $0x358] sm:$0xff]
    %v181 = vld [vmem:[#allocation5 + $0x360] sm:$0xff]
    %v182 = vld [vmem:[#allocation5 + $0x368] sm:$0xff]
    %v183 = vld [vmem:[#allocation5 + $0x370] sm:$0xff]
    %v184 = vld [vmem:[#allocation5 + $0x378] sm:$0xff]
    %v185 = vld [vmem:[#allocation5 + $0x380] sm:$0xff]
    %v186 = vld [vmem:[#allocation5 + $0x388] sm:$0xff]
    %v187 = vld [vmem:[#allocation5 + $0x390] sm:$0xff]
    %v188 = vld [vmem:[#allocation5 + $0x398] sm:$0xff]
    %v189 = vld [vmem:[#allocation5 + $0x3a0] sm:$0xff]
    %v190 = vld [vmem:[#allocation5 + $0x3a8] sm:$0xff]
    %v191 = vld [vmem:[#allocation5 + $0x3b0] sm:$0xff]
    %v192 = vld [vmem:[#allocation5 + $0x3b8] sm:$0xff]
    %v193 = vld [vmem:[#allocation5 + $0x3c0] sm:$0xff]
    %v194 = vld [vmem:[#allocation5 + $0x3c8] sm:$0xff]
    %v195 = vld [vmem:[#allocation5 + $0x3d0] sm:$0xff]
    %v196 = vld [vmem:[#allocation5 + $0x3d8] sm:$0xff]
    %v197 = vld [vmem:[#allocation5 + $0x3e0] sm:$0xff]
    %v198 = vld [vmem:[#allocation5 + $0x3e8] sm:$0xff]
    %v199 = vld [vmem:[#allocation5 + $0x3f0] sm:$0xff]
    %v200 = vld [vmem:[#allocation5 + $0x3f8] sm:$0xff]
    %v201 = vld [vmem:[#allocation7] sm:$0xff]
    %v203 = vlaneseq
    %v204 = vshrl.u32 %v203, 7
    %v205 = vsub.s32 0, %v204
    %v206 = vrot.slane %v201, %v205
    %v207 = vlaneseq
    %v208 = vshrl.u32 %v207, 7
    %v209 = vsub.s32 1, %v208
    %v210 = vrot.slane %v201, %v209
    %v211 = vlaneseq
    %v212 = vshrl.u32 %v211, 7
    %v213 = vsub.s32 2, %v212
    %v214 = vrot.slane %v201, %v213
    %v215 = vlaneseq
    %v216 = vshrl.u32 %v215, 7
    %v217 = vsub.s32 3, %v216
    %v218 = vrot.slane %v201, %v217
    %v219 = vlaneseq
    %v220 = vshrl.u32 %v219, 7
    %v221 = vsub.s32 4, %v220
    %v222 = vrot.slane %v201, %v221
    %v223 = vlaneseq
    %v224 = vshrl.u32 %v223, 7
    %v225 = vsub.s32 5, %v224
    %v226 = vrot.slane %v201, %v225
    %v227 = vlaneseq
    %v228 = vshrl.u32 %v227, 7
    %v229 = vsub.s32 6, %v228
    %v230 = vrot.slane %v201, %v229
    %v231 = vlaneseq
    %v232 = vshrl.u32 %v231, 7
    %v233 = vsub.s32 7, %v232
    %v234 = vrot.slane %v201, %v233
    %243 = vmatprep.subr.mxu0 %v194
    %244 = vmatpush1.msra.mxu0 %v193
    %245 = vmatprep.subr.mxu0 %v186
    %246 = vmatpush1.msra.mxu0 %v185
    %247 = vmatprep.subr.mxu0 %v178
    %248 = vmatpush1.msra.mxu0 %v177
    %249 = vmatprep.subr.mxu0 %v170
    %250 = vmatpush1.msra.mxu0 %v169
    %251 = vmatprep.subr.mxu0 %v162
    %252 = vmatpush1.msra.mxu0 %v161
    %253 = vmatprep.subr.mxu0 %v154
    %254 = vmatpush1.msra.mxu0 %v153
    %255 = vmatprep.subr.mxu0 %v146
    %256 = vmatpush1.msra.mxu0 %v145
    %257 = vmatprep.subr.mxu0 %v138
    %258 = vmatpush1.msra.mxu0 %v137
    %259 = vmatprep.subr.mxu0 %v130
    %260 = vmatpush1.msra.mxu0 %v129
    %261 = vmatprep.subr.mxu0 %v122
    %262 = vmatpush1.msra.mxu0 %v121
    %263 = vmatprep.subr.mxu0 %v114
    %264 = vmatpush1.msra.mxu0 %v113
    %265 = vmatprep.subr.mxu0 %v106
    %266 = vmatpush1.msra.mxu0 %v105
    %267 = vmatprep.subr.mxu0 %v98
    %268 = vmatpush1.msra.mxu0 %v97
    %269 = vmatprep.subr.mxu0 %v90
    %270 = vmatpush1.msra.mxu0 %v89
    %271 = vmatprep.subr.mxu0 %v82
    %272 = vmatpush1.msra.mxu0 %v81
    %273 = vmatprep.subr.mxu0 %v74
    %274 = vmatpush1.msra.mxu0 %v73
    %275 = vmatprep.subr.mxu0 0.0
    %276 = vmatpush2.msra.mxu0 0.0
    %277 = vmatprep.subr.mxu0 0.0
    %278 = vmatpush2.msra.mxu0 0.0
    %279 = vmatprep.subr.mxu0 0.0
    %280 = vmatpush2.msra.mxu0 0.0
    %281 = vmatprep.subr.mxu0 0.0
    %282 = vmatpush2.msra.mxu0 0.0
    %283 = vmatprep.subr.mxu0 0.0
    %284 = vmatpush2.msra.mxu0 0.0
    %285 = vmatprep.subr.mxu0 0.0
    %286 = vmatpush2.msra.mxu0 0.0
    %287 = vmatprep.subr.mxu0 0.0
    %288 = vmatpush2.msra.mxu0 0.0
    %289 = vmatprep.subr.mxu0 0.0
    %290 = vmatpush2.msra.mxu0 0.0
    %291 = vmatprep.subr.mxu0 0.0
    %292 = vmatpush2.msra.mxu0 0.0
    %293 = vmatprep.subr.mxu0 0.0
    %294 = vmatpush2.msra.mxu0 0.0
    %295 = vmatprep.subr.mxu0 0.0
    %296 = vmatpush2.msra.mxu0 0.0
    %297 = vmatprep.subr.mxu0 0.0
    %298 = vmatpush2.msra.mxu0 0.0
    %299 = vmatprep.subr.mxu0 0.0
    %300 = vmatpush2.msra.mxu0 0.0
    %301 = vmatprep.subr.mxu0 0.0
    %302 = vmatpush2.msra.mxu0 0.0
    %303 = vmatprep.subr.mxu0 0.0
    %304 = vmatpush2.msra.mxu0 0.0
    %305 = vmatprep.subr.mxu0 0.0
    %306 = vmatpush2.msra.mxu0 0.0
    %307 = vmatprep.mubr.f32.mxu0 0.0
    %308 = vmatmul.mubr.f32.gmra.mxu0 %v72
    %v309 = vpop.f32.mrf.mxu0
    %v310 = vadd.f32 %v206, %v309
    %v311 = vpop.f32.mrf.mxu0
    %v312 = vadd.f32 %v210, %v311
    %313 = vdwg.mxu0
    %314 = vmatprep.subr.mxu0 %v196
    %315 = vmatpush1.msra.mxu0 %v195
    %316 = vmatprep.subr.mxu0 %v188
    %317 = vmatpush1.msra.mxu0 %v187
    %318 = vmatprep.subr.mxu0 %v180
    %319 = vmatpush1.msra.mxu0 %v179
    %320 = vmatprep.subr.mxu0 %v172
    %321 = vmatpush1.msra.mxu0 %v171
    %322 = vmatprep.subr.mxu0 %v164
    %323 = vmatpush1.msra.mxu0 %v163
    %324 = vmatprep.subr.mxu0 %v156
    %325 = vmatpush1.msra.mxu0 %v155
    %326 = vmatprep.subr.mxu0 %v148
    %327 = vmatpush1.msra.mxu0 %v147
    %328 = vmatprep.subr.mxu0 %v140
    %329 = vmatpush1.msra.mxu0 %v139
    %330 = vmatprep.subr.mxu0 %v132
    %331 = vmatpush1.msra.mxu0 %v131
    %332 = vmatprep.subr.mxu0 %v124
    %333 = vmatpush1.msra.mxu0 %v123
    %334 = vmatprep.subr.mxu0 %v116
    %335 = vmatpush1.msra.mxu0 %v115
    %336 = vmatprep.subr.mxu0 %v108
    %337 = vmatpush1.msra.mxu0 %v107
    %338 = vmatprep.subr.mxu0 %v100
    %339 = vmatpush1.msra.mxu0 %v99
    %340 = vmatprep.subr.mxu0 %v92
    %341 = vmatpush1.msra.mxu0 %v91
    %342 = vmatprep.subr.mxu0 %v84
    %343 = vmatpush1.msra.mxu0 %v83
    %344 = vmatprep.subr.mxu0 %v76
    %345 = vmatpush1.msra.mxu0 %v75
    %346 = vmatprep.subr.mxu0 0.0
    %347 = vmatpush2.msra.mxu0 0.0
    %348 = vmatprep.subr.mxu0 0.0
    %349 = vmatpush2.msra.mxu0 0.0
    %350 = vmatprep.subr.mxu0 0.0
    %351 = vmatpush2.msra.mxu0 0.0
    %352 = vmatprep.subr.mxu0 0.0
    %353 = vmatpush2.msra.mxu0 0.0
    %354 = vmatprep.subr.mxu0 0.0
    %355 = vmatpush2.msra.mxu0 0.0
    %356 = vmatprep.subr.mxu0 0.0
    %357 = vmatpush2.msra.mxu0 0.0
    %358 = vmatprep.subr.mxu0 0.0
    %359 = vmatpush2.msra.mxu0 0.0
    %360 = vmatprep.subr.mxu0 0.0
    %361 = vmatpush2.msra.mxu0 0.0
    %362 = vmatprep.subr.mxu0 0.0
    %363 = vmatpush2.msra.mxu0 0.0
    %364 = vmatprep.subr.mxu0 0.0
    %365 = vmatpush2.msra.mxu0 0.0
    %366 = vmatprep.subr.mxu0 0.0
    %367 = vmatpush2.msra.mxu0 0.0
    %368 = vmatprep.subr.mxu0 0.0
    %369 = vmatpush2.msra.mxu0 0.0
    %370 = vmatprep.subr.mxu0 0.0
    %371 = vmatpush2.msra.mxu0 0.0
    %372 = vmatprep.subr.mxu0 0.0
    %373 = vmatpush2.msra.mxu0 0.0
    %374 = vmatprep.subr.mxu0 0.0
    %375 = vmatpush2.msra.mxu0 0.0
    %376 = vmatprep.subr.mxu0 0.0
    %377 = vmatpush2.msra.mxu0 0.0
    %378 = vmatprep.mubr.f32.mxu0 0.0
    %379 = vmatmul.mubr.f32.gmra.mxu0 %v72
    %v380 = vpop.f32.mrf.mxu0
    %v381 = vadd.f32 %v214, %v380
    %v382 = vpop.f32.mrf.mxu0
    %v383 = vadd.f32 %v218, %v382
    %384 = vdwg.mxu0
    %385 = vmatprep.subr.mxu0 %v198
    %386 = vmatpush1.msra.mxu0 %v197
    %387 = vmatprep.subr.mxu0 %v190
    %388 = vmatpush1.msra.mxu0 %v189
    %389 = vmatprep.subr.mxu0 %v182
    %390 = vmatpush1.msra.mxu0 %v181
    %391 = vmatprep.subr.mxu0 %v174
    %392 = vmatpush1.msra.mxu0 %v173
    %393 = vmatprep.subr.mxu0 %v166
    %394 = vmatpush1.msra.mxu0 %v165
    %395 = vmatprep.subr.mxu0 %v158
    %396 = vmatpush1.msra.mxu0 %v157
    %397 = vmatprep.subr.mxu0 %v150
    %398 = vmatpush1.msra.mxu0 %v149
    %399 = vmatprep.subr.mxu0 %v142
    %400 = vmatpush1.msra.mxu0 %v141
    %401 = vmatprep.subr.mxu0 %v134
    %402 = vmatpush1.msra.mxu0 %v133
    %403 = vmatprep.subr.mxu0 %v126
    %404 = vmatpush1.msra.mxu0 %v125
    %405 = vmatprep.subr.mxu0 %v118
    %406 = vmatpush1.msra.mxu0 %v117
    %407 = vmatprep.subr.mxu0 %v110
    %408 = vmatpush1.msra.mxu0 %v109
    %409 = vmatprep.subr.mxu0 %v102
    %410 = vmatpush1.msra.mxu0 %v101
    %411 = vmatprep.subr.mxu0 %v94
    %412 = vmatpush1.msra.mxu0 %v93
    %413 = vmatprep.subr.mxu0 %v86
    %414 = vmatpush1.msra.mxu0 %v85
    %415 = vmatprep.subr.mxu0 %v78
    %416 = vmatpush1.msra.mxu0 %v77
    %417 = vmatprep.subr.mxu0 0.0
    %418 = vmatpush2.msra.mxu0 0.0
    %419 = vmatprep.subr.mxu0 0.0
    %420 = vmatpush2.msra.mxu0 0.0
    %421 = vmatprep.subr.mxu0 0.0
    %422 = vmatpush2.msra.mxu0 0.0
    %423 = vmatprep.subr.mxu0 0.0
    %424 = vmatpush2.msra.mxu0 0.0
    %425 = vmatprep.subr.mxu0 0.0
    %426 = vmatpush2.msra.mxu0 0.0
    %427 = vmatprep.subr.mxu0 0.0
    %428 = vmatpush2.msra.mxu0 0.0
    %429 = vmatprep.subr.mxu0 0.0
    %430 = vmatpush2.msra.mxu0 0.0
    %431 = vmatprep.subr.mxu0 0.0
    %432 = vmatpush2.msra.mxu0 0.0
    %433 = vmatprep.subr.mxu0 0.0
    %434 = vmatpush2.msra.mxu0 0.0
    %435 = vmatprep.subr.mxu0 0.0
    %436 = vmatpush2.msra.mxu0 0.0
    %437 = vmatprep.subr.mxu0 0.0
    %438 = vmatpush2.msra.mxu0 0.0
    %439 = vmatprep.subr.mxu0 0.0
    %440 = vmatpush2.msra.mxu0 0.0
    %441 = vmatprep.subr.mxu0 0.0
    %442 = vmatpush2.msra.mxu0 0.0
    %443 = vmatprep.subr.mxu0 0.0
    %444 = vmatpush2.msra.mxu0 0.0
    %445 = vmatprep.subr.mxu0 0.0
    %446 = vmatpush2.msra.mxu0 0.0
    %447 = vmatprep.subr.mxu0 0.0
    %448 = vmatpush2.msra.mxu0 0.0
    %449 = vmatprep.mubr.f32.mxu0 0.0
    %450 = vmatmul.mubr.f32.gmra.mxu0 %v72
    %v451 = vpop.f32.mrf.mxu0
    %v452 = vadd.f32 %v222, %v451
    %v453 = vpop.f32.mrf.mxu0
    %v454 = vadd.f32 %v226, %v453
    %455 = vdwg.mxu0
    %456 = vmatprep.subr.mxu0 %v200
    %457 = vmatpush1.msra.mxu0 %v199
    %458 = vmatprep.subr.mxu0 %v192
    %459 = vmatpush1.msra.mxu0 %v191
    %460 = vmatprep.subr.mxu0 %v184
    %461 = vmatpush1.msra.mxu0 %v183
    %462 = vmatprep.subr.mxu0 %v176
    %463 = vmatpush1.msra.mxu0 %v175
    %464 = vmatprep.subr.mxu0 %v168
    %465 = vmatpush1.msra.mxu0 %v167
    %466 = vmatprep.subr.mxu0 %v160
    %467 = vmatpush1.msra.mxu0 %v159
    %468 = vmatprep.subr.mxu0 %v152
    %469 = vmatpush1.msra.mxu0 %v151
    %470 = vmatprep.subr.mxu0 %v144
    %471 = vmatpush1.msra.mxu0 %v143
    %472 = vmatprep.subr.mxu0 %v136
    %473 = vmatpush1.msra.mxu0 %v135
    %474 = vmatprep.subr.mxu0 %v128
    %475 = vmatpush1.msra.mxu0 %v127
    %476 = vmatprep.subr.mxu0 %v120
    %477 = vmatpush1.msra.mxu0 %v119
    %478 = vmatprep.subr.mxu0 %v112
    %479 = vmatpush1.msra.mxu0 %v111
    %480 = vmatprep.subr.mxu0 %v104
    %481 = vmatpush1.msra.mxu0 %v103
    %482 = vmatprep.subr.mxu0 %v96
    %483 = vmatpush1.msra.mxu0 %v95
    %484 = vmatprep.subr.mxu0 %v88
    %485 = vmatpush1.msra.mxu0 %v87
    %486 = vmatprep.subr.mxu0 %v80
    %487 = vmatpush1.msra.mxu0 %v79
    %488 = vmatprep.subr.mxu0 0.0
    %489 = vmatpush2.msra.mxu0 0.0
    %490 = vmatprep.subr.mxu0 0.0
    %491 = vmatpush2.msra.mxu0 0.0
    %492 = vmatprep.subr.mxu0 0.0
    %493 = vmatpush2.msra.mxu0 0.0
    %494 = vmatprep.subr.mxu0 0.0
    %495 = vmatpush2.msra.mxu0 0.0
    %496 = vmatprep.subr.mxu0 0.0
    %497 = vmatpush2.msra.mxu0 0.0
    %498 = vmatprep.subr.mxu0 0.0
    %499 = vmatpush2.msra.mxu0 0.0
    %500 = vmatprep.subr.mxu0 0.0
    %501 = vmatpush2.msra.mxu0 0.0
    %502 = vmatprep.subr.mxu0 0.0
    %503 = vmatpush2.msra.mxu0 0.0
    %504 = vmatprep.subr.mxu0 0.0
    %505 = vmatpush2.msra.mxu0 0.0
    %506 = vmatprep.subr.mxu0 0.0
    %507 = vmatpush2.msra.mxu0 0.0
    %508 = vmatprep.subr.mxu0 0.0
    %509 = vmatpush2.msra.mxu0 0.0
    %510 = vmatprep.subr.mxu0 0.0
    %511 = vmatpush2.msra.mxu0 0.0
    %512 = vmatprep.subr.mxu0 0.0
    %513 = vmatpush2.msra.mxu0 0.0
    %514 = vmatprep.subr.mxu0 0.0
    %515 = vmatpush2.msra.mxu0 0.0
    %516 = vmatprep.subr.mxu0 0.0
    %517 = vmatpush2.msra.mxu0 0.0
    %518 = vmatprep.subr.mxu0 0.0
    %519 = vmatpush2.msra.mxu0 0.0
    %520 = vmatprep.mubr.f32.mxu0 0.0
    %521 = vmatmul.mubr.f32.gmra.mxu0 %v72
    %v522 = vpop.f32.mrf.mxu0
    %v523 = vadd.f32 %v230, %v522
    %v524 = vpop.f32.mrf.mxu0
    %v525 = vadd.f32 %v234, %v524
    %526 = vdwg.mxu0
    %v527 = vmul.f32 %v310, 0.5
    %v528 = vmul.f32 %v312, 0.5
    %v529 = vmul.f32 %v381, 0.5
    %v530 = vmul.f32 %v383, 0.5
    %v531 = vmul.f32 %v452, 0.5
    %v532 = vmul.f32 %v454, 0.5
    %v533 = vmul.f32 %v523, 0.5
    %v534 = vmul.f32 %v525, 0.5
    %v535 = vmul.f32 %v310, 0.70710677
    %v536 = vmul.f32 %v312, 0.70710677
    %v537 = vmul.f32 %v381, 0.70710677
    %v538 = vmul.f32 %v383, 0.70710677
    %v539 = vmul.f32 %v452, 0.70710677
    %v540 = vmul.f32 %v454, 0.70710677
    %v541 = vmul.f32 %v523, 0.70710677
    %v542 = vmul.f32 %v525, 0.70710677
    %v543 = verf.f32.pop %v535
    %v544 = verf.f32.pop %v536
    %v545 = verf.f32.pop %v537
    %v546 = verf.f32.pop %v538
    %v547 = verf.f32.pop %v539
    %v548 = verf.f32.pop %v540
    %v549 = verf.f32.pop %v541
    %v550 = verf.f32.pop %v542
    %v551 = vadd.f32 %v543, 1.0
    %v552 = vadd.f32 %v544, 1.0
    %v553 = vadd.f32 %v545, 1.0
    %v554 = vadd.f32 %v546, 1.0
    %v555 = vadd.f32 %v547, 1.0
    %v556 = vadd.f32 %v548, 1.0
    %v557 = vadd.f32 %v549, 1.0
    %v558 = vadd.f32 %v550, 1.0
    %v559 = vmul.f32 %v527, %v551
    %v560 = vmul.f32 %v528, %v552
    %v561 = vmul.f32 %v529, %v553
    %v562 = vmul.f32 %v530, %v554
    %v563 = vmul.f32 %v531, %v555
    %v564 = vmul.f32 %v532, %v556
    %v565 = vmul.f32 %v533, %v557
    %v566 = vmul.f32 %v534, %v558
    %v567 = vld [vmem:[#allocation8] sm:$0xff]
    %v568 = vld [vmem:[#allocation8 + $0x8] sm:$0xff]
    %v569 = vld [vmem:[#allocation8 + $0x10] sm:$0xff]
    %v570 = vld [vmem:[#allocation8 + $0x18] sm:$0xff]
    %v571 = vld [vmem:[#allocation8 + $0x20] sm:$0xff]
    %v572 = vld [vmem:[#allocation8 + $0x28] sm:$0xff]
    %v573 = vld [vmem:[#allocation8 + $0x30] sm:$0xff]
    %v574 = vld [vmem:[#allocation8 + $0x38] sm:$0xff]
    %v575 = vld [vmem:[#allocation8 + $0x40] sm:$0xff]
    %v576 = vld [vmem:[#allocation8 + $0x48] sm:$0xff]
    %v577 = vld [vmem:[#allocation8 + $0x50] sm:$0xff]
    %v578 = vld [vmem:[#allocation8 + $0x58] sm:$0xff]
    %v579 = vld [vmem:[#allocation8 + $0x60] sm:$0xff]
    %v580 = vld [vmem:[#allocation8 + $0x68] sm:$0xff]
    %v581 = vld [vmem:[#allocation8 + $0x70] sm:$0xff]
    %v582 = vld [vmem:[#allocation8 + $0x78] sm:$0xff]
    %v583 = vld [vmem:[#allocation8 + $0x80] sm:$0xff]
    %v584 = vld [vmem:[#allocation8 + $0x88] sm:$0xff]
    %v585 = vld [vmem:[#allocation8 + $0x90] sm:$0xff]
    %v586 = vld [vmem:[#allocation8 + $0x98] sm:$0xff]
    %v587 = vld [vmem:[#allocation8 + $0xa0] sm:$0xff]
    %v588 = vld [vmem:[#allocation8 + $0xa8] sm:$0xff]
    %v589 = vld [vmem:[#allocation8 + $0xb0] sm:$0xff]
    %v590 = vld [vmem:[#allocation8 + $0xb8] sm:$0xff]
    %v591 = vld [vmem:[#allocation8 + $0xc0] sm:$0xff]
    %v592 = vld [vmem:[#allocation8 + $0xc8] sm:$0xff]
    %v593 = vld [vmem:[#allocation8 + $0xd0] sm:$0xff]
    %v594 = vld [vmem:[#allocation8 + $0xd8] sm:$0xff]
    %v595 = vld [vmem:[#allocation8 + $0xe0] sm:$0xff]
    %v596 = vld [vmem:[#allocation8 + $0xe8] sm:$0xff]
    %v597 = vld [vmem:[#allocation8 + $0xf0] sm:$0xff]
    %v598 = vld [vmem:[#allocation8 + $0xf8] sm:$0xff]
    %v599 = vld [vmem:[#allocation8 + $0x100] sm:$0xff]
    %v600 = vld [vmem:[#allocation8 + $0x108] sm:$0xff]
    %v601 = vld [vmem:[#allocation8 + $0x110] sm:$0xff]
    %v602 = vld [vmem:[#allocation8 + $0x118] sm:$0xff]
    %v603 = vld [vmem:[#allocation8 + $0x120] sm:$0xff]
    %v604 = vld [vmem:[#allocation8 + $0x128] sm:$0xff]
    %v605 = vld [vmem:[#allocation8 + $0x130] sm:$0xff]
    %v606 = vld [vmem:[#allocation8 + $0x138] sm:$0xff]
    %v607 = vld [vmem:[#allocation8 + $0x140] sm:$0xff]
    %v608 = vld [vmem:[#allocation8 + $0x148] sm:$0xff]
    %v609 = vld [vmem:[#allocation8 + $0x150] sm:$0xff]
    %v610 = vld [vmem:[#allocation8 + $0x158] sm:$0xff]
    %v611 = vld [vmem:[#allocation8 + $0x160] sm:$0xff]
    %v612 = vld [vmem:[#allocation8 + $0x168] sm:$0xff]
    %v613 = vld [vmem:[#allocation8 + $0x170] sm:$0xff]
    %v614 = vld [vmem:[#allocation8 + $0x178] sm:$0xff]
    %v615 = vld [vmem:[#allocation8 + $0x180] sm:$0xff]
    %v616 = vld [vmem:[#allocation8 + $0x188] sm:$0xff]
    %v617 = vld [vmem:[#allocation8 + $0x190] sm:$0xff]
    %v618 = vld [vmem:[#allocation8 + $0x198] sm:$0xff]
    %v619 = vld [vmem:[#allocation8 + $0x1a0] sm:$0xff]
    %v620 = vld [vmem:[#allocation8 + $0x1a8] sm:$0xff]
    %v621 = vld [vmem:[#allocation8 + $0x1b0] sm:$0xff]
    %v622 = vld [vmem:[#allocation8 + $0x1b8] sm:$0xff]
    %v623 = vld [vmem:[#allocation8 + $0x1c0] sm:$0xff]
    %v624 = vld [vmem:[#allocation8 + $0x1c8] sm:$0xff]
    %v625 = vld [vmem:[#allocation8 + $0x1d0] sm:$0xff]
    %v626 = vld [vmem:[#allocation8 + $0x1d8] sm:$0xff]
    %v627 = vld [vmem:[#allocation8 + $0x1e0] sm:$0xff]
    %v628 = vld [vmem:[#allocation8 + $0x1e8] sm:$0xff]
    %v629 = vld [vmem:[#allocation8 + $0x1f0] sm:$0xff]
    %v630 = vld [vmem:[#allocation8 + $0x1f8] sm:$0xff]
    %v631 = vld [vmem:[#allocation8 + $0x200] sm:$0xff]
    %v632 = vld [vmem:[#allocation8 + $0x208] sm:$0xff]
    %v633 = vld [vmem:[#allocation8 + $0x210] sm:$0xff]
    %v634 = vld [vmem:[#allocation8 + $0x218] sm:$0xff]
    %v635 = vld [vmem:[#allocation8 + $0x220] sm:$0xff]
    %v636 = vld [vmem:[#allocation8 + $0x228] sm:$0xff]
    %v637 = vld [vmem:[#allocation8 + $0x230] sm:$0xff]
    %v638 = vld [vmem:[#allocation8 + $0x238] sm:$0xff]
    %v639 = vld [vmem:[#allocation8 + $0x240] sm:$0xff]
    %v640 = vld [vmem:[#allocation8 + $0x248] sm:$0xff]
    %v641 = vld [vmem:[#allocation8 + $0x250] sm:$0xff]
    %v642 = vld [vmem:[#allocation8 + $0x258] sm:$0xff]
    %v643 = vld [vmem:[#allocation8 + $0x260] sm:$0xff]
    %v644 = vld [vmem:[#allocation8 + $0x268] sm:$0xff]
    %v645 = vld [vmem:[#allocation8 + $0x270] sm:$0xff]
    %v646 = vld [vmem:[#allocation8 + $0x278] sm:$0xff]
    %v647 = vld [vmem:[#allocation8 + $0x280] sm:$0xff]
    %v648 = vld [vmem:[#allocation8 + $0x288] sm:$0xff]
    %v649 = vld [vmem:[#allocation8 + $0x290] sm:$0xff]
    %v650 = vld [vmem:[#allocation8 + $0x298] sm:$0xff]
    %v651 = vld [vmem:[#allocation8 + $0x2a0] sm:$0xff]
    %v652 = vld [vmem:[#allocation8 + $0x2a8] sm:$0xff]
    %v653 = vld [vmem:[#allocation8 + $0x2b0] sm:$0xff]
    %v654 = vld [vmem:[#allocation8 + $0x2b8] sm:$0xff]
    %v655 = vld [vmem:[#allocation8 + $0x2c0] sm:$0xff]
    %v656 = vld [vmem:[#allocation8 + $0x2c8] sm:$0xff]
    %v657 = vld [vmem:[#allocation8 + $0x2d0] sm:$0xff]
    %v658 = vld [vmem:[#allocation8 + $0x2d8] sm:$0xff]
    %v659 = vld [vmem:[#allocation8 + $0x2e0] sm:$0xff]
    %v660 = vld [vmem:[#allocation8 + $0x2e8] sm:$0xff]
    %v661 = vld [vmem:[#allocation8 + $0x2f0] sm:$0xff]
    %v662 = vld [vmem:[#allocation8 + $0x2f8] sm:$0xff]
    %v663 = vld [vmem:[#allocation8 + $0x300] sm:$0xff]
    %v664 = vld [vmem:[#allocation8 + $0x308] sm:$0xff]
    %v665 = vld [vmem:[#allocation8 + $0x310] sm:$0xff]
    %v666 = vld [vmem:[#allocation8 + $0x318] sm:$0xff]
    %v667 = vld [vmem:[#allocation8 + $0x320] sm:$0xff]
    %v668 = vld [vmem:[#allocation8 + $0x328] sm:$0xff]
    %v669 = vld [vmem:[#allocation8 + $0x330] sm:$0xff]
    %v670 = vld [vmem:[#allocation8 + $0x338] sm:$0xff]
    %v671 = vld [vmem:[#allocation8 + $0x340] sm:$0xff]
    %v672 = vld [vmem:[#allocation8 + $0x348] sm:$0xff]
    %v673 = vld [vmem:[#allocation8 + $0x350] sm:$0xff]
    %v674 = vld [vmem:[#allocation8 + $0x358] sm:$0xff]
    %v675 = vld [vmem:[#allocation8 + $0x360] sm:$0xff]
    %v676 = vld [vmem:[#allocation8 + $0x368] sm:$0xff]
    %v677 = vld [vmem:[#allocation8 + $0x370] sm:$0xff]
    %v678 = vld [vmem:[#allocation8 + $0x378] sm:$0xff]
    %v679 = vld [vmem:[#allocation8 + $0x380] sm:$0xff]
    %v680 = vld [vmem:[#allocation8 + $0x388] sm:$0xff]
    %v681 = vld [vmem:[#allocation8 + $0x390] sm:$0xff]
    %v682 = vld [vmem:[#allocation8 + $0x398] sm:$0xff]
    %v683 = vld [vmem:[#allocation8 + $0x3a0] sm:$0xff]
    %v684 = vld [vmem:[#allocation8 + $0x3a8] sm:$0xff]
    %v685 = vld [vmem:[#allocation8 + $0x3b0] sm:$0xff]
    %v686 = vld [vmem:[#allocation8 + $0x3b8] sm:$0xff]
    %v687 = vld [vmem:[#allocation8 + $0x3c0] sm:$0xff]
    %v688 = vld [vmem:[#allocation8 + $0x3c8] sm:$0xff]
    %v689 = vld [vmem:[#allocation8 + $0x3d0] sm:$0xff]
    %v690 = vld [vmem:[#allocation8 + $0x3d8] sm:$0xff]
    %v691 = vld [vmem:[#allocation8 + $0x3e0] sm:$0xff]
    %v692 = vld [vmem:[#allocation8 + $0x3e8] sm:$0xff]
    %v693 = vld [vmem:[#allocation8 + $0x3f0] sm:$0xff]
    %v694 = vld [vmem:[#allocation8 + $0x3f8] sm:$0xff]
    %v695 = vld [vmem:[%s4] sm:$0x1]
    %v697 = vlaneseq
    %v698 = vshrl.u32 %v697, 7
    %v699 = vsub.s32 0, %v698
    %v700 = vrot.slane %v695, %v699
    %702 = vmatprep.subr.mxu0 0.0
    %703 = vmatpush1.msra.mxu0 %v582
    %704 = vmatprep.subr.mxu0 0.0
    %705 = vmatpush1.msra.mxu0 %v581
    %706 = vmatprep.subr.mxu0 0.0
    %707 = vmatpush1.msra.mxu0 %v580
    %708 = vmatprep.subr.mxu0 0.0
    %709 = vmatpush1.msra.mxu0 %v579
    %710 = vmatprep.subr.mxu0 0.0
    %711 = vmatpush1.msra.mxu0 %v578
    %712 = vmatprep.subr.mxu0 0.0
    %713 = vmatpush1.msra.mxu0 %v577
    %714 = vmatprep.subr.mxu0 0.0
    %715 = vmatpush1.msra.mxu0 %v576
    %716 = vmatprep.subr.mxu0 0.0
    %717 = vmatpush1.msra.mxu0 %v575
    %718 = vmatprep.subr.mxu0 0.0
    %719 = vmatpush1.msra.mxu0 %v574
    %720 = vmatprep.subr.mxu0 0.0
    %721 = vmatpush1.msra.mxu0 %v573
    %722 = vmatprep.subr.mxu0 0.0
    %723 = vmatpush1.msra.mxu0 %v572
    %724 = vmatprep.subr.mxu0 0.0
    %725 = vmatpush1.msra.mxu0 %v571
    %726 = vmatprep.subr.mxu0 0.0
    %727 = vmatpush1.msra.mxu0 %v570
    %728 = vmatprep.subr.mxu0 0.0
    %729 = vmatpush1.msra.mxu0 %v569
    %730 = vmatprep.subr.mxu0 0.0
    %731 = vmatpush1.msra.mxu0 %v568
    %732 = vmatprep.subr.mxu0 0.0
    %733 = vmatpush1.msra.mxu0 %v567
    %734 = vmatprep.subr.mxu0 0.0
    %735 = vmatpush2.msra.mxu0 %v598
    %736 = vmatprep.subr.mxu0 0.0
    %737 = vmatpush2.msra.mxu0 %v597
    %738 = vmatprep.subr.mxu0 0.0
    %739 = vmatpush2.msra.mxu0 %v596
    %740 = vmatprep.subr.mxu0 0.0
    %741 = vmatpush2.msra.mxu0 %v595
    %742 = vmatprep.subr.mxu0 0.0
    %743 = vmatpush2.msra.mxu0 %v594
    %744 = vmatprep.subr.mxu0 0.0
    %745 = vmatpush2.msra.mxu0 %v593
    %746 = vmatprep.subr.mxu0 0.0
    %747 = vmatpush2.msra.mxu0 %v592
    %748 = vmatprep.subr.mxu0 0.0
    %749 = vmatpush2.msra.mxu0 %v591
    %750 = vmatprep.subr.mxu0 0.0
    %751 = vmatpush2.msra.mxu0 %v590
    %752 = vmatprep.subr.mxu0 0.0
    %753 = vmatpush2.msra.mxu0 %v589
    %754 = vmatprep.subr.mxu0 0.0
    %755 = vmatpush2.msra.mxu0 %v588
    %756 = vmatprep.subr.mxu0 0.0
    %757 = vmatpush2.msra.mxu0 %v587
    %758 = vmatprep.subr.mxu0 0.0
    %759 = vmatpush2.msra.mxu0 %v586
    %760 = vmatprep.subr.mxu0 0.0
    %761 = vmatpush2.msra.mxu0 %v585
    %762 = vmatprep.subr.mxu0 0.0
    %763 = vmatpush2.msra.mxu0 %v584
    %764 = vmatprep.subr.mxu0 0.0
    %765 = vmatpush2.msra.mxu0 %v583
    %766 = vmatprep.mubr.f32.mxu0 %v560
    %767 = vmatmul.mubr.f32.gmra.mxu0 %v559
    %v768 = vpop.f32.mrf.mxu0
    %v769 = vadd.f32 %v700, %v768
    %v770 = vpop.f32.mrf.mxu0
    %771 = vdwg.mxu0
    %772 = vmatprep.subr.mxu0 0.0
    %773 = vmatpush1.msra.mxu0 %v614
    %774 = vmatprep.subr.mxu0 0.0
    %775 = vmatpush1.msra.mxu0 %v613
    %776 = vmatprep.subr.mxu0 0.0
    %777 = vmatpush1.msra.mxu0 %v612
    %778 = vmatprep.subr.mxu0 0.0
    %779 = vmatpush1.msra.mxu0 %v611
    %780 = vmatprep.subr.mxu0 0.0
    %781 = vmatpush1.msra.mxu0 %v610
    %782 = vmatprep.subr.mxu0 0.0
    %783 = vmatpush1.msra.mxu0 %v609
    %784 = vmatprep.subr.mxu0 0.0
    %785 = vmatpush1.msra.mxu0 %v608
    %786 = vmatprep.subr.mxu0 0.0
    %787 = vmatpush1.msra.mxu0 %v607
    %788 = vmatprep.subr.mxu0 0.0
    %789 = vmatpush1.msra.mxu0 %v606
    %790 = vmatprep.subr.mxu0 0.0
    %791 = vmatpush1.msra.mxu0 %v605
    %792 = vmatprep.subr.mxu0 0.0
    %793 = vmatpush1.msra.mxu0 %v604
    %794 = vmatprep.subr.mxu0 0.0
    %795 = vmatpush1.msra.mxu0 %v603
    %796 = vmatprep.subr.mxu0 0.0
    %797 = vmatpush1.msra.mxu0 %v602
    %798 = vmatprep.subr.mxu0 0.0
    %799 = vmatpush1.msra.mxu0 %v601
    %800 = vmatprep.subr.mxu0 0.0
    %801 = vmatpush1.msra.mxu0 %v600
    %802 = vmatprep.subr.mxu0 0.0
    %803 = vmatpush1.msra.mxu0 %v599
    %804 = vmatprep.subr.mxu0 0.0
    %805 = vmatpush2.msra.mxu0 %v630
    %806 = vmatprep.subr.mxu0 0.0
    %807 = vmatpush2.msra.mxu0 %v629
    %808 = vmatprep.subr.mxu0 0.0
    %809 = vmatpush2.msra.mxu0 %v628
    %810 = vmatprep.subr.mxu0 0.0
    %811 = vmatpush2.msra.mxu0 %v627
    %812 = vmatprep.subr.mxu0 0.0
    %813 = vmatpush2.msra.mxu0 %v626
    %814 = vmatprep.subr.mxu0 0.0
    %815 = vmatpush2.msra.mxu0 %v625
    %816 = vmatprep.subr.mxu0 0.0
    %817 = vmatpush2.msra.mxu0 %v624
    %818 = vmatprep.subr.mxu0 0.0
    %819 = vmatpush2.msra.mxu0 %v623
    %820 = vmatprep.subr.mxu0 0.0
    %821 = vmatpush2.msra.mxu0 %v622
    %822 = vmatprep.subr.mxu0 0.0
    %823 = vmatpush2.msra.mxu0 %v621
    %824 = vmatprep.subr.mxu0 0.0
    %825 = vmatpush2.msra.mxu0 %v620
    %826 = vmatprep.subr.mxu0 0.0
    %827 = vmatpush2.msra.mxu0 %v619
    %828 = vmatprep.subr.mxu0 0.0
    %829 = vmatpush2.msra.mxu0 %v618
    %830 = vmatprep.subr.mxu0 0.0
    %831 = vmatpush2.msra.mxu0 %v617
    %832 = vmatprep.subr.mxu0 0.0
    %833 = vmatpush2.msra.mxu0 %v616
    %834 = vmatprep.subr.mxu0 0.0
    %835 = vmatpush2.msra.mxu0 %v615
    %836 = vmatprep.mubr.f32.mxu0 %v562
    %837 = vmatmul.mubr.f32.gmra.mxu0 %v561
    %v838 = vpop.f32.mrf.mxu0
    %v839 = vadd.f32 %v769, %v838
    %v840 = vpop.f32.mrf.mxu0
    %841 = vdwg.mxu0
    %842 = vmatprep.subr.mxu0 0.0
    %843 = vmatpush1.msra.mxu0 %v646
    %844 = vmatprep.subr.mxu0 0.0
    %845 = vmatpush1.msra.mxu0 %v645
    %846 = vmatprep.subr.mxu0 0.0
    %847 = vmatpush1.msra.mxu0 %v644
    %848 = vmatprep.subr.mxu0 0.0
    %849 = vmatpush1.msra.mxu0 %v643
    %850 = vmatprep.subr.mxu0 0.0
    %851 = vmatpush1.msra.mxu0 %v642
    %852 = vmatprep.subr.mxu0 0.0
    %853 = vmatpush1.msra.mxu0 %v641
    %854 = vmatprep.subr.mxu0 0.0
    %855 = vmatpush1.msra.mxu0 %v640
    %856 = vmatprep.subr.mxu0 0.0
    %857 = vmatpush1.msra.mxu0 %v639
    %858 = vmatprep.subr.mxu0 0.0
    %859 = vmatpush1.msra.mxu0 %v638
    %860 = vmatprep.subr.mxu0 0.0
    %861 = vmatpush1.msra.mxu0 %v637
    %862 = vmatprep.subr.mxu0 0.0
    %863 = vmatpush1.msra.mxu0 %v636
    %864 = vmatprep.subr.mxu0 0.0
    %865 = vmatpush1.msra.mxu0 %v635
    %866 = vmatprep.subr.mxu0 0.0
    %867 = vmatpush1.msra.mxu0 %v634
    %868 = vmatprep.subr.mxu0 0.0
    %869 = vmatpush1.msra.mxu0 %v633
    %870 = vmatprep.subr.mxu0 0.0
    %871 = vmatpush1.msra.mxu0 %v632
    %872 = vmatprep.subr.mxu0 0.0
    %873 = vmatpush1.msra.mxu0 %v631
    %874 = vmatprep.subr.mxu0 0.0
    %875 = vmatpush2.msra.mxu0 %v662
    %876 = vmatprep.subr.mxu0 0.0
    %877 = vmatpush2.msra.mxu0 %v661
    %878 = vmatprep.subr.mxu0 0.0
    %879 = vmatpush2.msra.mxu0 %v660
    %880 = vmatprep.subr.mxu0 0.0
    %881 = vmatpush2.msra.mxu0 %v659
    %882 = vmatprep.subr.mxu0 0.0
    %883 = vmatpush2.msra.mxu0 %v658
    %884 = vmatprep.subr.mxu0 0.0
    %885 = vmatpush2.msra.mxu0 %v657
    %886 = vmatprep.subr.mxu0 0.0
    %887 = vmatpush2.msra.mxu0 %v656
    %888 = vmatprep.subr.mxu0 0.0
    %889 = vmatpush2.msra.mxu0 %v655
    %890 = vmatprep.subr.mxu0 0.0
    %891 = vmatpush2.msra.mxu0 %v654
    %892 = vmatprep.subr.mxu0 0.0
    %893 = vmatpush2.msra.mxu0 %v653
    %894 = vmatprep.subr.mxu0 0.0
    %895 = vmatpush2.msra.mxu0 %v652
    %896 = vmatprep.subr.mxu0 0.0
    %897 = vmatpush2.msra.mxu0 %v651
    %898 = vmatprep.subr.mxu0 0.0
    %899 = vmatpush2.msra.mxu0 %v650
    %900 = vmatprep.subr.mxu0 0.0
    %901 = vmatpush2.msra.mxu0 %v649
    %902 = vmatprep.subr.mxu0 0.0
    %903 = vmatpush2.msra.mxu0 %v648
    %904 = vmatprep.subr.mxu0 0.0
    %905 = vmatpush2.msra.mxu0 %v647
    %906 = vmatprep.mubr.f32.mxu0 %v564
    %907 = vmatmul.mubr.f32.gmra.mxu0 %v563
    %v908 = vpop.f32.mrf.mxu0
    %v909 = vadd.f32 %v839, %v908
    %v910 = vpop.f32.mrf.mxu0
    %911 = vdwg.mxu0
    %912 = vmatprep.subr.mxu0 0.0
    %913 = vmatpush1.msra.mxu0 %v678
    %914 = vmatprep.subr.mxu0 0.0
    %915 = vmatpush1.msra.mxu0 %v677
    %916 = vmatprep.subr.mxu0 0.0
    %917 = vmatpush1.msra.mxu0 %v676
    %918 = vmatprep.subr.mxu0 0.0
    %919 = vmatpush1.msra.mxu0 %v675
    %920 = vmatprep.subr.mxu0 0.0
    %921 = vmatpush1.msra.mxu0 %v674
    %922 = vmatprep.subr.mxu0 0.0
    %923 = vmatpush1.msra.mxu0 %v673
    %924 = vmatprep.subr.mxu0 0.0
    %925 = vmatpush1.msra.mxu0 %v672
    %926 = vmatprep.subr.mxu0 0.0
    %927 = vmatpush1.msra.mxu0 %v671
    %928 = vmatprep.subr.mxu0 0.0
    %929 = vmatpush1.msra.mxu0 %v670
    %930 = vmatprep.subr.mxu0 0.0
    %931 = vmatpush1.msra.mxu0 %v669
    %932 = vmatprep.subr.mxu0 0.0
    %933 = vmatpush1.msra.mxu0 %v668
    %934 = vmatprep.subr.mxu0 0.0
    %935 = vmatpush1.msra.mxu0 %v667
    %936 = vmatprep.subr.mxu0 0.0
    %937 = vmatpush1.msra.mxu0 %v666
    %938 = vmatprep.subr.mxu0 0.0
    %939 = vmatpush1.msra.mxu0 %v665
    %940 = vmatprep.subr.mxu0 0.0
    %941 = vmatpush1.msra.mxu0 %v664
    %942 = vmatprep.subr.mxu0 0.0
    %943 = vmatpush1.msra.mxu0 %v663
    %944 = vmatprep.subr.mxu0 0.0
    %945 = vmatpush2.msra.mxu0 %v694
    %946 = vmatprep.subr.mxu0 0.0
    %947 = vmatpush2.msra.mxu0 %v693
    %948 = vmatprep.subr.mxu0 0.0
    %949 = vmatpush2.msra.mxu0 %v692
    %950 = vmatprep.subr.mxu0 0.0
    %951 = vmatpush2.msra.mxu0 %v691
    %952 = vmatprep.subr.mxu0 0.0
    %953 = vmatpush2.msra.mxu0 %v690
    %954 = vmatprep.subr.mxu0 0.0
    %955 = vmatpush2.msra.mxu0 %v689
    %956 = vmatprep.subr.mxu0 0.0
    %957 = vmatpush2.msra.mxu0 %v688
    %958 = vmatprep.subr.mxu0 0.0
    %959 = vmatpush2.msra.mxu0 %v687
    %960 = vmatprep.subr.mxu0 0.0
    %961 = vmatpush2.msra.mxu0 %v686
    %962 = vmatprep.subr.mxu0 0.0
    %963 = vmatpush2.msra.mxu0 %v685
    %964 = vmatprep.subr.mxu0 0.0
    %965 = vmatpush2.msra.mxu0 %v684
    %966 = vmatprep.subr.mxu0 0.0
    %967 = vmatpush2.msra.mxu0 %v683
    %968 = vmatprep.subr.mxu0 0.0
    %969 = vmatpush2.msra.mxu0 %v682
    %970 = vmatprep.subr.mxu0 0.0
    %971 = vmatpush2.msra.mxu0 %v681
    %972 = vmatprep.subr.mxu0 0.0
    %973 = vmatpush2.msra.mxu0 %v680
    %974 = vmatprep.subr.mxu0 0.0
    %975 = vmatpush2.msra.mxu0 %v679
    %976 = vmatprep.mubr.f32.mxu0 %v566
    %977 = vmatmul.mubr.f32.gmra.mxu0 %v565
    %v978 = vpop.f32.mrf.mxu0
    %v979 = vadd.f32 %v909, %v978
    %v980 = vpop.f32.mrf.mxu0
    %981 = vdwg.mxu0
    %982 = vst [vmem:[#allocation10] sm:$0xf] %v979
    // Predicated region
    $region38: #{tpu_custom_call.1} parent=1 // pred_check
      _
    $region39: #{tpu_custom_call.1} parent=1 // pred_check_branch
      %984 = sbr.rel (0) target = $region41
    $region40: #{tpu_custom_call.1} parent=1 // pred_region
      %s986 = ssub.s32 64, 64
      %987 = vsyncadd [#allocation4], %s986
      %s989 = sshll.u32 [#allocation10], 4
      %s990 = int_to_ptr.vmem [resolvable:$true] %s989
      %992 = dma.vmem_to_hbm [thread:$0]  %s990, 64, %s5, [#allocation4]
    $region41: #{tpu_custom_call.1} parent=1 // pred_fallthru
      _
    // Predicated region
    $region42: #{tpu_custom_call.1} parent=1 // pred_check
      _
    $region43: #{tpu_custom_call.1} parent=1 // pred_check_branch
      %994 = sbr.rel (0) target = $region45
    $region44: #{tpu_custom_call.1} parent=1 // pred_region
      %995 = dma.done [#allocation4], 64
    $region45: #{tpu_custom_call.1} parent=1 // pred_fallthru
      _
    %996 = vsyncpa [#allocation3], 1
    %997 = vsyncpa [#allocation6], 1
    %998 = vsyncpa [#allocation9], 1
    %999 = vsyncpa [#allocation4], 1

</llo_original>
